<compile_context>
chip_gen: v7x
topology: tpu7x:2x2x1
jax: 0.10.0
libtpu: 0.0.40
codegen_flags: <defaults>
</compile_context>

<pallas_src>
import math
import functools

import jax
import jax.numpy as jnp
from jax import lax
from jax.experimental import pallas as pl
from jax.experimental.pallas import tpu as pltpu

_MASK_VALUE = -1e30            # finite "-inf": exp underflows to exactly 0, no NaNs
_VMEM_LIMIT = 48 * 1024 * 1024  # safe on v5e/v6e (128 MiB) and below v7x's 64 MiB


def _pick_tile(n, candidates):
    """Largest candidate that evenly divides n, else the full extent."""
    for c in candidates:
        if n % c == 0:
            return c
    return n


# ---------------------------------------------------------------------------
# Kernel 1: fused QKV projection  out = x @ [Wq*s | Wk | Wv] + [bq*s | bk | bv]
#   grid = (rows/tm, 3H/tn, E/tke); K (=E) axis is the reduction (P3 pattern).
#   bf16 operands, f32 accumulation, bf16 output (feeds the flash kernel).
# ---------------------------------------------------------------------------
def _qkv_proj_kernel(x_ref, w_ref, b_ref, o_ref, acc_ref):
    ke = pl.program_id(2)

    @pl.when(ke == 0)
    def _():
        acc_ref[...] = jnp.zeros_like(acc_ref)

    acc_ref[...] += jnp.dot(x_ref[...], w_ref[...],
                            preferred_element_type=jnp.float32)

    @pl.when(ke == pl.num_programs(2) - 1)
    def _():
        o_ref[...] = (acc_ref[...] + b_ref[...]).astype(o_ref.dtype)


# ---------------------------------------------------------------------------
# Kernel 2: flash attention with online softmax over a group of heads.
#   grid = (B * groups_per_batch, num_q_tiles, num_k_tiles); k-tile axis is the
#   reduction.  q_ref/k_ref/v_ref are column slices of the (B*S, 3H) fused
#   projection output; o_ref is a column slice of the final (B*S, H) output.
# ---------------------------------------------------------------------------
def _flash_attn_kernel(q_ref, k_ref, v_ref, mask_ref, o_ref,
                       m_scr, l_scr, acc_scr,
                       *, heads, head_dim, q_base, k_base, v_base):
    ki = pl.program_id(2)

    @pl.when(ki == 0)
    def _():
        m_scr[...] = jnp.full_like(m_scr, -jnp.inf)
        l_scr[...] = jnp.zeros_like(l_scr)
        acc_scr[...] = jnp.zeros_like(acc_scr)

    # One compare per tile (shared by all heads in the group).
    # TODO(synk): for structured (e.g. causal) masks, classify tiles via scalar
    # prefetch and skip fully-masked / fully-visible tiles instead of streaming.
    masked = mask_ref[0] == 0                                        # (tq, tk)

    for h in range(heads):
        q = q_ref[:, pl.ds(q_base + h * head_dim, head_dim)]        # (tq, hd) bf16
        k = k_ref[:, pl.ds(k_base + h * head_dim, head_dim)]        # (tk, hd) bf16
        v = v_ref[:, pl.ds(v_base + h * head_dim, head_dim)]        # (tk, hd) bf16

        # scores = q @ k^T (q already carries the 1/sqrt(hd) scale); contract
        # the last dims of both operands -> no explicit transpose.
        s = lax.dot_general(q, k, (((1,), (1,)), ((), ())),
                            preferred_element_type=jnp.float32)     # (tq, tk) f32
        s = jnp.where(masked, jnp.float32(_MASK_VALUE), s)

        m_prev = m_scr[h]                                            # (tq, 1)
        m_new = jnp.maximum(m_prev, jnp.max(s, axis=-1, keepdims=True))
        alpha = jnp.exp(m_prev - m_new)
        p = jnp.exp(s - m_new)                                       # (tq, tk) f32

        l_scr[h] = alpha * l_scr[h] + jnp.sum(p, axis=-1, keepdims=True)
        acc_scr[h] = alpha * acc_scr[h] + jnp.dot(
            p.astype(v.dtype), v, preferred_element_type=jnp.float32)
        m_scr[h] = m_new

    @pl.when(ki == pl.num_programs(2) - 1)
    def _():
        outs = []
        for h in range(heads):
            inv_l = pl.reciprocal(l_scr[h], approx=True)             # EUP slot
            outs.append((acc_scr[h] * inv_l).astype(o_ref.dtype))
        # One dense (tq, heads*hd) store (lane-dense, no per-head partial stores).
        o_ref[...] = jnp.concatenate(outs, axis=-1) if heads > 1 else outs[0]


# ---------------------------------------------------------------------------
# Wrapper
# ---------------------------------------------------------------------------
def mha_forward(x, wq, wk, wv, bq, bk, bv, mask, *, head_num):
    B, S, E = x.shape
    H = wq.shape[1]
    NH = head_num
    hd = H // NH
    scale = 1.0 / math.sqrt(hd)

    # Fold the 1/sqrt(hd) scale into the Q weight/bias (done once, O(E*H)),
    # fuse the three projections, and cast MXU operands to bf16.
    w_qkv = jnp.concatenate([wq * scale, wk, wv], axis=1).astype(jnp.bfloat16)
    b_qkv = jnp.concatenate([bq.reshape(1, H) * scale,
                             bk.reshape(1, H),
                             bv.reshape(1, H)], axis=1).astype(jnp.float32)

    R = B * S
    x2 = x.reshape(R, E).astype(jnp.bfloat16)       # free reshape + bf16 cast

    # ---- Kernel 1: fused QKV projection -----------------------------------
    tm = _pick_tile(R, (512, 256, 128, 64, 32, 16, 8))
    tn = _pick_tile(3 * H, (512, 256, 128))
    tke = _pick_tile(E, (512, 256, 128))

    qkv = pl.pallas_call(
        _qkv_proj_kernel,
        out_shape=jax.ShapeDtypeStruct((R, 3 * H), jnp.bfloat16),
        grid_spec=pltpu.PrefetchScalarGridSpec(
            num_scalar_prefetch=0,
            grid=(R // tm, (3 * H) // tn, E // tke),
            in_specs=[
                pl.BlockSpec((tm, tke), lambda i, n, ke: (i, ke)),   # x rows
                pl.BlockSpec((tke, tn), lambda i, n, ke: (ke, n)),   # fused weight
                pl.BlockSpec((1, tn), lambda i, n, ke: (0, n)),      # fused bias
            ],
            out_specs=pl.BlockSpec((tm, tn), lambda i, n, ke: (i, n)),
            scratch_shapes=[pltpu.VMEM((tm, tn), jnp.float32)],
        ),
        compiler_params=pltpu.CompilerParams(
            dimension_semantics=("parallel", "parallel", "arbitrary"),
            vmem_limit_bytes=_VMEM_LIMIT),
    )(x2, w_qkv, b_qkv)

    # ---- Kernel 2: flash attention, reading the (R, 3H) qkv directly ------
    mask_i8 = (mask != 0).astype(jnp.int8)           # 4x less HBM than f32

    tq = _pick_tile(S, (256, 128))
    tk = _pick_tile(S, (512, 256, 128))
    nq, nk = S // tq, S // tk

    # Head grouping: smallest divisor G of NH with G*hd a multiple of 128
    # -> lane-dense column blocks.  Otherwise (small heads, e.g. the test) take
    # the full column extent and process all heads of a batch per grid step.
    G = None
    for g in range(1, NH + 1):
        if NH % g == 0 and (g * hd) % 128 == 0:
            G = g
            break

    if G is not None:
        ngpb = NH // G                      # head groups per batch
        in_w, out_w = G * hd, G * hd
        q_base, k_base, v_base = 0, 0, 0
        q_cb = lambda gg: gg
        k_cb = lambda gg: ngpb + gg
        v_cb = lambda gg: 2 * ngpb + gg
        o_cb = lambda gg: gg
    else:
        G = NH
        ngpb = 1
        in_w, out_w = 3 * H, H              # full column extent (128-lane rule)
        q_base, k_base, v_base = 0, H, 2 * H
        q_cb = k_cb = v_cb = o_cb = (lambda gg: 0)

    def q_map(bg, qi, ki):
        return (bg // ngpb * nq + qi, q_cb(bg % ngpb))

    def k_map(bg, qi, ki):
        return (bg // ngpb * nk + ki, k_cb(bg % ngpb))

    def v_map(bg, qi, ki):
        return (bg // ngpb * nk + ki, v_cb(bg % ngpb))

    def o_map(bg, qi, ki):
        return (bg // ngpb * nq + qi, o_cb(bg % ngpb))

    def mask_map(bg, qi, ki):
        return (bg // ngpb, qi, ki)          # one mask stream per batch/group

    out2 = pl.pallas_call(
        functools.partial(_flash_attn_kernel, heads=G, head_dim=hd,
                          q_base=q_base, k_base=k_base, v_base=v_base),
        out_shape=jax.ShapeDtypeStruct((R, H), jnp.float32),
        grid_spec=pltpu.PrefetchScalarGridSpec(
            num_scalar_prefetch=0,
            grid=(B * ngpb, nq, nk),
            in_specs=[
                pl.BlockSpec((tq, in_w), q_map),       # Q columns of qkv
                pl.BlockSpec((tk, in_w), k_map),       # K columns of qkv
                pl.BlockSpec((tk, in_w), v_map),       # V columns of qkv
                pl.BlockSpec((1, tq, tk), mask_map),   # int8 mask tile
            ],
            out_specs=pl.BlockSpec((tq, out_w), o_map),
            scratch_shapes=[
                pltpu.VMEM((G, tq, 1), jnp.float32),   # running max m
                pltpu.VMEM((G, tq, 1), jnp.float32),   # running denom l
                pltpu.VMEM((G, tq, hd), jnp.float32),  # output accumulator
            ],
        ),
        compiler_params=pltpu.CompilerParams(
            dimension_semantics=("parallel", "parallel", "arbitrary"),
            vmem_limit_bytes=_VMEM_LIMIT),
    )(qkv, qkv, qkv, mask_i8)

    # TODO(synk): optional fp8 (e4m3) MXU operands on v7x only, gated on accuracy.
    return out2.reshape(B, S, H)             # free reshape, layout already (B*S, H)


# ---------------------------------------------------------------------------
# Pure-JAX reference mirroring the PyTorch forward (f32).
# ---------------------------------------------------------------------------
def mha_reference(x, wq, wk, wv, bq, bk, bv, mask, *, head_num):
    B, S, E = x.shape
    H = wq.shape[1]
    hd = H // head_num
    q = (x @ wq + bq).reshape(B, S, head_num, hd).transpose(0, 2, 1, 3)
    k = (x @ wk + bk).reshape(B, S, head_num, hd).transpose(0, 2, 1, 3)
    v = (x @ wv + bv).reshape(B, S, head_num, hd).transpose(0, 2, 1, 3)
    scores = jnp.einsum("bhqd,bhkd->bhqk", q, k) / math.sqrt(hd)
    scores = jnp.where(mask[:, None, :, :] == 0, -jnp.inf, scores)
    p = jax.nn.softmax(scores, axis=-1)
    out = jnp.einsum("bhqk,bhkd->bhqd", p, v)
    return out.transpose(0, 2, 1, 3).reshape(B, S, H)


if __name__ == "__main__":
    # Small shapes consistent with the module:
    #   embed_dim=32, hidden_dim=32, head_num=4 (head_dim=8), batch=2, seq=8
    B, S, E, H, NH = 2, 8, 32, 32, 4
    key = jax.random.PRNGKey(0)
    kx, kq, kk, kv, kbq, kbk, kbv = jax.random.split(key, 7)

    x = jax.random.normal(kx, (B, S, E), dtype=jnp.float32)
    wq = jax.random.normal(kq, (E, H), dtype=jnp.float32) * 0.1
    wk = jax.random.normal(kk, (E, H), dtype=jnp.float32) * 0.1
    wv = jax.random.normal(kv, (E, H), dtype=jnp.float32) * 0.1
    bq = jax.random.normal(kbq, (1, H), dtype=jnp.float32) * 0.1
    bk = jax.random.normal(kbk, (1, H), dtype=jnp.float32) * 0.1
    bv = jax.random.normal(kbv, (1, H), dtype=jnp.float32) * 0.1

    # Causal attention mask (0 = masked out), broadcast over heads.
    causal = jnp.tril(jnp.ones((S, S), dtype=jnp.float32))
    mask = jnp.broadcast_to(causal, (B, S, S))

    out = mha_forward(x, wq, wk, wv, bq, bk, bv, mask, head_num=NH)
    out = jax.block_until_ready(out)

    ref = mha_reference(x, wq, wk, wv, bq, bk, bv, mask, head_num=NH)
    assert out.shape == (B, S, H)
    # bf16 MXU operands + approx reciprocal -> compare at bf16-appropriate tolerance.
    assert jnp.allclose(out, ref, atol=3e-2, rtol=3e-2), "mismatch vs reference"

    print("KERNEL_OK")
</pallas_src>

<mosaic_0001>
module attributes {stable_mosaic.version = 11 : i64} {
  func.func @_qkv_proj_kernel(%arg0: i32, %arg1: i32, %arg2: i32, %arg3: memref<16x32xbf16, #tpu.memory_space<vmem>>, %arg4: memref<32x96xbf16, #tpu.memory_space<vmem>>, %arg5: memref<1x96xf32, #tpu.memory_space<vmem>>, %arg6: memref<16x96xbf16, #tpu.memory_space<vmem>>, %arg7: memref<16x96xf32, #tpu.memory_space<vmem>>) attributes {dimension_semantics = [#tpu.dimension_semantics<parallel>, #tpu.dimension_semantics<parallel>, #tpu.dimension_semantics<arbitrary>], iteration_bounds = array<i64: 1, 1, 1>, scalar_prefetch = 0 : i64, scratch_operands = 1 : i64, tpu.core_type = #tpu.core_type<tc>, window_params = [{transform_indices = @transform_0, window_bounds = array<i64: 16, 32>}, {transform_indices = @transform_1, window_bounds = array<i64: 32, 96>}, {transform_indices = @transform_2, window_bounds = array<i64: 1, 96>}, {transform_indices = @transform_3, window_bounds = array<i64: 16, 96>}]} {
    %c0_i32 = arith.constant 0 : i32
    %0 = arith.cmpi eq, %arg2, %c0_i32 : i32
    %1 = arith.extui %0 : i1 to i32
    %c0_i32_0 = arith.constant 0 : i32
    %2 = arith.cmpi ne, %1, %c0_i32_0 : i32
    scf.if %2 {
      %cst_10 = arith.constant 0.000000e+00 : f32
      %12 = vector.broadcast %cst_10 : f32 to vector<16x96xf32>
      %c0_11 = arith.constant 0 : index
      %c0_12 = arith.constant 0 : index
      %13 = vector.load %arg7[%c0_11, %c0_12] : memref<16x96xf32, #tpu.memory_space<vmem>>, vector<16x96xf32>
      tpu.vector_store %arg7[%c0_11, %c0_12], %12 {strides = array<i32>} : memref<16x96xf32, #tpu.memory_space<vmem>>, vector<16x96xf32>,
    } else {
    }
    %c0 = arith.constant 0 : index
    %c0_1 = arith.constant 0 : index
    %3 = vector.load %arg7[%c0, %c0_1] : memref<16x96xf32, #tpu.memory_space<vmem>>, vector<16x96xf32>
    %c0_2 = arith.constant 0 : index
    %c0_3 = arith.constant 0 : index
    %4 = vector.load %arg3[%c0_2, %c0_3] : memref<16x32xbf16, #tpu.memory_space<vmem>>, vector<16x32xbf16>
    %c0_4 = arith.constant 0 : index
    %c0_5 = arith.constant 0 : index
    %5 = vector.load %arg4[%c0_4, %c0_5] : memref<32x96xbf16, #tpu.memory_space<vmem>>, vector<32x96xbf16>
    %cst = arith.constant dense<0.000000e+00> : vector<16x96xf32>
    %6 = tpu.matmul %4, %5, %cst {dimension_numbers = #tpu.dot_dimension_numbers<[1], [0], [0], [1], [0, 0, 1, 1], [], []>} : vector<16x32xbf16>, vector<32x96xbf16>, vector<16x96xf32> -> vector<16x96xf32>
    %7 = arith.addf %3, %6 : vector<16x96xf32>
    %c0_6 = arith.constant 0 : index
    %c0_7 = arith.constant 0 : index
    %8 = vector.load %arg7[%c0_6, %c0_7] : memref<16x96xf32, #tpu.memory_space<vmem>>, vector<16x96xf32>
    tpu.vector_store %arg7[%c0_6, %c0_7], %7 {strides = array<i32>} : memref<16x96xf32, #tpu.memory_space<vmem>>, vector<16x96xf32>,
    %c0_i32_8 = arith.constant 0 : i32
    %9 = arith.cmpi eq, %arg2, %c0_i32_8 : i32
    %10 = arith.extui %9 : i1 to i32
    %c0_i32_9 = arith.constant 0 : i32
    %11 = arith.cmpi ne, %10, %c0_i32_9 : i32
    scf.if %11 {
      %c0_10 = arith.constant 0 : index
      %c0_11 = arith.constant 0 : index
      %12 = vector.load %arg7[%c0_10, %c0_11] : memref<16x96xf32, #tpu.memory_space<vmem>>, vector<16x96xf32>
      %c0_12 = arith.constant 0 : index
      %c0_13 = arith.constant 0 : index
      %13 = vector.load %arg5[%c0_12, %c0_13] : memref<1x96xf32, #tpu.memory_space<vmem>>, vector<1x96xf32>
      %14 = vector.broadcast %13 : vector<1x96xf32> to vector<16x96xf32>
      %15 = arith.addf %12, %14 : vector<16x96xf32>
      %16 = arith.truncf %15 : vector<16x96xf32> to vector<16x96xbf16>
      %c0_14 = arith.constant 0 : index
      %c0_15 = arith.constant 0 : index
      %17 = vector.load %arg6[%c0_14, %c0_15] : memref<16x96xbf16, #tpu.memory_space<vmem>>, vector<16x96xbf16>
      tpu.vector_store %arg6[%c0_14, %c0_15], %16 {strides = array<i32>} : memref<16x96xbf16, #tpu.memory_space<vmem>>, vector<16x96xbf16>,
    } else {
    }
    return
  }
  func.func @transform_0(%arg0: i32, %arg1: i32, %arg2: i32) -> (i32, i32) {
    %c0_i32 = arith.constant 0 : i32
    return %arg0, %arg2 : i32, i32
  }
  func.func @transform_1(%arg0: i32, %arg1: i32, %arg2: i32) -> (i32, i32) {
    %c0_i32 = arith.constant 0 : i32
    return %arg2, %arg1 : i32, i32
  }
  func.func @transform_2(%arg0: i32, %arg1: i32, %arg2: i32) -> (i32, i32) {
    %c0_i32 = arith.constant 0 : i32
    %c0_i32_0 = arith.constant 0 : i32
    return %c0_i32, %arg1 : i32, i32
  }
  func.func @transform_3(%arg0: i32, %arg1: i32, %arg2: i32) -> (i32, i32) {
    %c0_i32 = arith.constant 0 : i32
    return %arg0, %arg1 : i32, i32
  }
}

</mosaic_0001>

<llo_original>
// kernel: tpu_custom_call.1
$region0: #{tpu_custom_call.1}
  #allocation0 [shape = 'u32[]', space=smem, size = 0x4, offset = 0x4, fixed_abs, tag = 'smem constant byte address 0x4 - core index']
  #allocation1 [shape = 'u32[144,128]{1,0:T(1,128)}', space=vmem, size = 0x12000, scoped, tag = 'internal scratch']
  #allocation2 [shape = 'f32[16,96]{1,0:T(8,128)}', space=vmem, size = 0x2000, scoped, tag = 'scratch operand']
  %s0 = inlined_call_operand.hbm [shape: bf16[16,32], index: 0, kind: input, shape index: {}]
  %s1 = inlined_call_operand.hbm [shape: bf16[32,96], index: 1, kind: input, shape index: {}]
  %s2 = inlined_call_operand.vmem [shape: f32[1,96], index: 2, kind: input, shape index: {}]
  %s3 = inlined_call_operand.hbm [shape: bf16[16,96], index: 3, kind: output, shape index: {}]
  %s4 = sld [smem:[#allocation0]]
  $region38: #{tpu_custom_call.1} parent=0
    _
  %s6 = ssub.s32 1, %s4
  %s7 = scalar_select 0, %s6, %s4
  $region1: #{tpu_custom_call.1} parent=0
    #allocation3 [shape = 'u8[4096]{0}', space=vmem, size = 0x1000, scoped, tag = 'input window, operand 0, single buffered']
    #allocation4 [shape = 's32[1]{0}', space=sflag, size = 0x4, scoped, tag = 'scoped memory for tpu_custom_call.1']
    #allocation5 [shape = 's32[1]{0}', space=sflag, size = 0x4, scoped, tag = 'scoped memory for tpu_custom_call.1']
    #allocation6 [shape = 'u8[8192]{0}', space=vmem, size = 0x2000, scoped, tag = 'input window, operand 1, single buffered']
    #allocation7 [shape = 's32[1]{0}', space=sflag, size = 0x4, scoped, tag = 'scoped memory for tpu_custom_call.1']
    #allocation8 [shape = 'u8[4096]{0}', space=vmem, size = 0x1000, scoped, tag = 'output window, operand 0, single buffered']
    %8 = vsyncpa [#allocation4], 0
    %9 = vsyncpa [#allocation7], 0
    %10 = vsyncpa [#allocation5], 0
    // Predicated region
    $region2: #{tpu_custom_call.1} parent=1 // pred_check
      _
    $region3: #{tpu_custom_call.1} parent=1 // pred_check_branch
      %12 = sbr.rel (0) target = $region5
    $region4: #{tpu_custom_call.1} parent=1 // pred_region
      %s14 = ssub.s32 128, 128
      %15 = vsyncadd [#allocation4], %s14
      %s16 = sshll.u32 [#allocation3], 4
      %s17 = int_to_ptr.vmem [resolvable:$true] %s16
      %22 = dma.hbm_to_vmem [thread:$0]  %s0, 128, %s17, [#allocation4], 64, 64, 4
    $region5: #{tpu_custom_call.1} parent=1 // pred_fallthru
      _
    // Predicated region
    $region6: #{tpu_custom_call.1} parent=1 // pred_check
      _
    $region7: #{tpu_custom_call.1} parent=1 // pred_check_branch
      %24 = sbr.rel (0) target = $region9
    $region8: #{tpu_custom_call.1} parent=1 // pred_region
      %s26 = ssub.s32 256, 256
      %27 = vsyncadd [#allocation7], %s26
      %s28 = sshll.u32 [#allocation6], 4
      %s29 = int_to_ptr.vmem [resolvable:$true] %s28
      %34 = dma.hbm_to_vmem [thread:$0]  %s1, 256, %s29, [#allocation7], 64, 64, 4
    $region9: #{tpu_custom_call.1} parent=1 // pred_fallthru
      _
    // Predicated region
    $region10: #{tpu_custom_call.1} parent=1 // pred_check
      _
    $region11: #{tpu_custom_call.1} parent=1 // pred_check_branch
      %36 = sbr.rel (0) target = $region13
    $region12: #{tpu_custom_call.1} parent=1 // pred_region
      _
    $region13: #{tpu_custom_call.1} parent=1 // pred_fallthru
      _
    // Predicated region
    $region14: #{tpu_custom_call.1} parent=1 // pred_check
      _
    $region15: #{tpu_custom_call.1} parent=1 // pred_check_branch
      %38 = sbr.rel (0) target = $region17
    $region16: #{tpu_custom_call.1} parent=1 // pred_region
      %39 = dma.done [#allocation4], 128
    $region17: #{tpu_custom_call.1} parent=1 // pred_fallthru
      _
    // Predicated region
    $region18: #{tpu_custom_call.1} parent=1 // pred_check
      _
    $region19: #{tpu_custom_call.1} parent=1 // pred_check_branch
      %41 = sbr.rel (0) target = $region21
    $region20: #{tpu_custom_call.1} parent=1 // pred_region
      %42 = dma.done [#allocation7], 256
    $region21: #{tpu_custom_call.1} parent=1 // pred_fallthru
      _
    %p44 = scmp.eq.s32.totalorder 0, 0
    // Predicated region
    $region22: #{tpu_custom_call.1} parent=1 // pred_check
      %p45 = pneg %p44
    $region23: #{tpu_custom_call.1} parent=1 // pred_check_branch
      %47 = sbr.rel (%p45) target = $region25
    $region24: #{tpu_custom_call.1} parent=1 // pred_region
      %vm48 = vcmask 785408
      %49 = vst.msk [vmem:[#allocation2] sm:$0xff] %vm48, 0.0
      %50 = vst.msk [vmem:[#allocation2 + $0x8] sm:$0xff] %vm48, 0.0
    $region25: #{tpu_custom_call.1} parent=1 // pred_fallthru
      _
    %v51 = vld [vmem:[#allocation2] sm:$0xff]
    %v52 = vld [vmem:[#allocation2 + $0x8] sm:$0xff]
    %v53 = vld [vmem:[#allocation3] sm:$0xf]
    %v54 = vld [vmem:[#allocation3 + $0x4] sm:$0xf]
    %v55 = vld [vmem:[#allocation6] sm:$0xf]
    %v56 = vld [vmem:[#allocation6 + $0x4] sm:$0xf]
    %v57 = vld [vmem:[#allocation6 + $0x8] sm:$0xf]
    %v58 = vld [vmem:[#allocation6 + $0xc] sm:$0xf]
    %v61 = vunpack.c.l.b16 %v53
    %v62 = vunpack.c.l.b16 %v54
    %v63 = vpack.c.b16 %v62, %v61
    %v68 = vunpack.c.l.b16 %v55
    %v69 = vunpack.c.l.b16 %v56
    %v70 = vunpack.c.l.b16 %v57
    %v71 = vunpack.c.l.b16 %v58
    %v72 = vpack.c.b16 %v69, %v68
    %v73 = vpack.c.b16 %v71, %v70
    %vm76 = vcmask 261120
    %v78 = vsel %vm76, %v63, 0
    %80 = vmatprep.subr.bf16.mxu0 0
    %81 = vmatpush1.bf16.msra.mxu0 %v72
    %82 = vmatprep.subr.bf16.mxu0 0
    %83 = vmatpush1.bf16.msra.mxu0 %v73
    %84 = vmatprep.subr.bf16.mxu0 0
    %85 = vmatpush1.bf16.msra.mxu0 0
    %86 = vmatprep.subr.bf16.mxu0 0
    %87 = vmatpush1.bf16.msra.mxu0 0
    %88 = vmatprep.subr.bf16.mxu0 0
    %89 = vmatpush1.bf16.msra.mxu0 0
    %90 = vmatprep.subr.bf16.mxu0 0
    %91 = vmatpush1.bf16.msra.mxu0 0
    %92 = vmatprep.subr.bf16.mxu0 0
    %93 = vmatpush1.bf16.msra.mxu0 0
    %94 = vmatprep.subr.bf16.mxu0 0
    %95 = vmatpush1.bf16.msra.mxu0 0
    %96 = vmatprep.subr.bf16.mxu0 0
    %97 = vmatpush1.bf16.msra.mxu0 0
    %98 = vmatprep.subr.bf16.mxu0 0
    %99 = vmatpush1.bf16.msra.mxu0 0
    %100 = vmatprep.subr.bf16.mxu0 0
    %101 = vmatpush1.bf16.msra.mxu0 0
    %102 = vmatprep.subr.bf16.mxu0 0
    %103 = vmatpush1.bf16.msra.mxu0 0
    %104 = vmatprep.subr.bf16.mxu0 0
    %105 = vmatpush1.bf16.msra.mxu0 0
    %106 = vmatprep.subr.bf16.mxu0 0
    %107 = vmatpush1.bf16.msra.mxu0 0
    %108 = vmatprep.subr.bf16.mxu0 0
    %109 = vmatpush1.bf16.msra.mxu0 0
    %110 = vmatprep.subr.bf16.mxu0 0
    %111 = vmatpush1.bf16.msra.mxu0 0
    %112 = vmatprep.mubr.bf16.mxu0 0
    %113 = vmatmul.mubr.bf16.gmra.mrb[0].mxu0 %v78
    %v114 = vpop.f32.mrb[0].mxu0
    %v115 = vadd.f32 0.0, %v114
    %v116 = vpop.f32.mrb[0].mxu0
    %v117 = vpop.f32.mrb[0].mxu0
    %v118 = vadd.f32 0.0, %v117
    %v119 = vpop.f32.mrb[0].mxu0
    %120 = vdwg.mxu0
    %v121 = vadd.f32 %v51, %v115
    %v122 = vadd.f32 %v52, %v118
    %vm123 = vcmask 785408
    %124 = vst.msk [vmem:[#allocation2] sm:$0xff] %vm123, %v121
    %125 = vst.msk [vmem:[#allocation2 + $0x8] sm:$0xff] %vm123, %v122
    // Predicated region
    $region26: #{tpu_custom_call.1} parent=1 // pred_check
      %p126 = pneg %p44
    $region27: #{tpu_custom_call.1} parent=1 // pred_check_branch
      %128 = sbr.rel (%p126) target = $region29
    $region28: #{tpu_custom_call.1} parent=1 // pred_region
      %v129 = vld [vmem:[#allocation2] sm:$0xff]
      %v130 = vld [vmem:[#allocation2 + $0x8] sm:$0xff]
      %v131 = vld [vmem:[%s2] sm:$0x1]
      %v133 = vlaneseq
      %v134 = vshrl.u32 %v133, 7
      %v135 = vsub.s32 0, %v134
      %v136 = vrot.slane %v131, %v135
      %v138 = vadd.f32 %v129, %v136
      %v139 = vadd.f32 %v130, %v136
      %v140 = vpack.c.bf16 %v139, %v138
      %v142 = vunpack.c.l.b16 %v140
      %v143 = vunpack.c.h.b16 %v140
      %v144 = vpack.c.b16 %v142, %v142
      %v145 = vpack.c.b16 %v143, %v143
      %vm148 = vcmask 781312
      %149 = vst.msk [vmem:[#allocation8] sm:$0xf] %vm148, %v144
      %150 = vst.msk [vmem:[#allocation8 + $0x4] sm:$0xf] %vm148, %v145
    $region29: #{tpu_custom_call.1} parent=1 // pred_fallthru
      _
    // Predicated region
    $region30: #{tpu_custom_call.1} parent=1 // pred_check
      _
    $region31: #{tpu_custom_call.1} parent=1 // pred_check_branch
      %152 = sbr.rel (0) target = $region33
    $region32: #{tpu_custom_call.1} parent=1 // pred_region
      %s154 = ssub.s32 128, 128
      %155 = vsyncadd [#allocation5], %s154
      %s156 = sshll.u32 [#allocation8], 4
      %s157 = int_to_ptr.vmem [resolvable:$true] %s156
      %162 = dma.vmem_to_hbm [thread:$0]  %s157, 128, %s3, [#allocation5], 64, 64, 4
    $region33: #{tpu_custom_call.1} parent=1 // pred_fallthru
      _
    // Predicated region
    $region34: #{tpu_custom_call.1} parent=1 // pred_check
      _
    $region35: #{tpu_custom_call.1} parent=1 // pred_check_branch
      %164 = sbr.rel (0) target = $region37
    $region36: #{tpu_custom_call.1} parent=1 // pred_region
      %165 = dma.done [#allocation5], 128
    $region37: #{tpu_custom_call.1} parent=1 // pred_fallthru
      _
    %166 = vsyncpa [#allocation4], 1
    %167 = vsyncpa [#allocation7], 1
    %168 = vsyncpa [#allocation5], 1

</llo_original>
